<compile_context>
chip_gen: v5e
topology: v5e:2x2
jax: 0.10.0
libtpu: 0.0.40
codegen_flags: <defaults>
</compile_context>

<pallas_src>
import functools

import jax
import jax.numpy as jnp
from jax.experimental import pallas as pl
from jax.experimental.pallas import tpu as pltpu


_SQRT_2_OVER_PI = 0.7978845608028654  # sqrt(2 / pi)
_MiB = 1024 * 1024


def _gelu_tanh_f32(h):
    # 0.5 * h * (1 + tanh(sqrt(2/pi) * (h + 0.044715 * h^3)))
    # with the cubic folded as h * (1 + 0.044715 * h * h)  (saves one VPU multiply).
    return 0.5 * h * (1.0 + jnp.tanh(_SQRT_2_OVER_PI * h * (1.0 + 0.044715 * h * h)))


def _round_up(x, m):
    return ((x + m - 1) // m) * m


def _cdiv(a, b):
    return -(-a // b)


def _vmem_capacity_bytes():
    # 128 MiB on v5e/v6e, 64 MiB per TensorCore on v7x. Conservative fallback if the
    # trace-time query is unavailable.
    try:
        return int(pltpu.get_tpu_info().vmem_capacity_bytes)
    except Exception:
        return 64 * _MiB


@functools.lru_cache(maxsize=None)
def _buffered_one_supported():
    """Probe (once) whether pipeline_mode=pl.Buffered(1) lowers on this jax/libtpu."""
    def probe(w_ref, x_ref, o_ref):
        o_ref[...] = x_ref[...] + w_ref[...]

    try:
        x = jnp.zeros((16, 128), jnp.float32)
        w = jnp.ones((8, 128), jnp.float32)
        out = pl.pallas_call(
            probe,
            out_shape=jax.ShapeDtypeStruct((16, 128), jnp.float32),
            grid=(2,),
            in_specs=[
                pl.BlockSpec((8, 128), lambda i: (0, 0), pipeline_mode=pl.Buffered(1)),
                pl.BlockSpec((8, 128), lambda i: (i, 0)),
            ],
            out_specs=pl.BlockSpec((8, 128), lambda i: (i, 0)),
        )(w, x)
        jax.block_until_ready(out)
        return True
    except Exception:
        return False


# --------------------------------------------------------------------------------------
# Kernel 1: resident-weight path.  grid = (M // tm,), w1/b1/w2/b2 fully VMEM-resident.
# --------------------------------------------------------------------------------------
def _ff_resident_kernel(x_ref, w1_ref, b1_ref, w2_ref, b2_ref, o_ref):
    # x_ref: [tm, D], w1_ref: [D, H], b1_ref: [1, H], w2_ref: [H, D], b2_ref: [1, D]
    x = x_ref[...]  # native dtype (bf16 stays bf16 for the MXU); accumulate in f32.
    h = jnp.dot(x, w1_ref[...], preferred_element_type=jnp.float32)
    h = h + b1_ref[...].astype(jnp.float32)

    g = _gelu_tanh_f32(h)                     # elementwise math in f32 (safe on v5e too)
    g = g.astype(w2_ref.dtype)                # back to weight dtype for the second MXU pass

    out = jnp.dot(g, w2_ref[...], preferred_element_type=jnp.float32)
    out = out + b2_ref[...].astype(jnp.float32)
    o_ref[...] = out.astype(o_ref.dtype)


# --------------------------------------------------------------------------------------
# Kernel 2: H-tiled reduction path.  grid = (M // tm, H // th), f32 accumulator in VMEM.
# --------------------------------------------------------------------------------------
def _ff_htiled_kernel(x_ref, w1_ref, b1_ref, w2_ref, b2_ref, o_ref, acc_ref):
    # x_ref: [tm, D], w1_ref: [D, th], b1_ref: [1, th], w2_ref: [th, D], b2_ref: [1, D]
    j = pl.program_id(1)

    @pl.when(j == 0)
    def _():
        acc_ref[...] = jnp.zeros_like(acc_ref)

    x = x_ref[...]
    h = jnp.dot(x, w1_ref[...], preferred_element_type=jnp.float32)
    h = h + b1_ref[...].astype(jnp.float32)

    g = _gelu_tanh_f32(h)
    g = g.astype(w2_ref.dtype)

    acc_ref[...] += jnp.dot(g, w2_ref[...], preferred_element_type=jnp.float32)

    @pl.when(j == pl.num_programs(1) - 1)
    def _():
        o_ref[...] = (acc_ref[...] + b2_ref[...].astype(jnp.float32)).astype(o_ref.dtype)


# --------------------------------------------------------------------------------------
# Wrapper
# --------------------------------------------------------------------------------------
def _feedforward_xla(x, w1, b1, w2, b2):
    """Plain-XLA fallback for lane-unfriendly widths (D not a multiple of 128)."""
    h = jnp.einsum("bsd,dh->bsh", x, w1,
                   preferred_element_type=jnp.float32) + b1.astype(jnp.float32)
    g = _gelu_tanh_f32(h).astype(w2.dtype)
    out = jnp.einsum("bsh,hd->bsd", g, w2,
                     preferred_element_type=jnp.float32) + b2.astype(jnp.float32)
    return out.astype(x.dtype)


def _pick_th(H, D, tm, w_itemsize, act_itemsize, budget):
    """Largest hidden tile (multiple of 128, dividing H) whose VMEM estimate fits."""
    cands = [t for t in range(128, H + 1, 128) if H % t == 0]
    for t in sorted(cands, reverse=True):
        est = (2 * (2 * D * t + t + D) * w_itemsize   # streamed w1/b1/w2/b2 tiles (2 bufs)
               + 4 * tm * D * act_itemsize            # x + out tiles, double-buffered
               + tm * D * 4                           # f32 accumulator scratch
               + tm * t * (4 + w_itemsize))           # f32 hidden + cast copy
        if est <= budget:
            return t
    return cands[0]


def feedforward(x, w1, b1, w2, b2, *, tm=None, th=None, mode="auto",
                vmem_budget_bytes=None):
    """x: [B, S, D]; w1: [D, 4D]; b1: [4D]; w2: [4D, D]; b2: [D]."""
    B, S, D = x.shape
    H = w1.shape[1]
    assert w1.shape == (D, H) and w2.shape == (H, D)
    assert b1.shape == (H,) and b2.shape == (D,)

    # Toy / unaligned widths: masked partial stores and poor MXU K-utilization make a
    # Pallas kernel a loss below one full lane; defer to XLA (GPT-scale D >= 768 is fine).
    if D % 128 != 0:
        return _feedforward_xla(x, w1, b1, w2, b2)

    M = B * S
    w_itemsize = jnp.dtype(w1.dtype).itemsize
    act_itemsize = jnp.dtype(x.dtype).itemsize

    cap = _vmem_capacity_bytes()
    if vmem_budget_bytes is None:
        # Generation-aware: ~96 MiB on 128-MiB-VMEM chips (v5e/v6e), ~48 MiB on v7x.
        vmem_budget_bytes = max(32 * _MiB, int(cap * 0.75))
    vmem_headroom = 6 * _MiB

    buffered_ok = _buffered_one_supported()
    wbuf = 1 if buffered_ok else 2
    weight_pipeline = {"pipeline_mode": pl.Buffered(1)} if buffered_ok else {}

    def resident_bytes(tm_):
        return (wbuf * (D * H + H * D + H + D) * w_itemsize   # w1/b1/w2/b2 (Buffered(1): 1x)
                + 4 * tm_ * D * act_itemsize                  # x + out tiles, double-buffered
                + tm_ * H * (4 + w_itemsize)                  # f32 hidden + cast copy
                + tm_ * D * 4)                                # f32 output intermediate

    def htiled_bytes(tm_, th_):
        return (2 * (2 * D * th_ + th_ + D) * w_itemsize
                + 4 * tm_ * D * act_itemsize
                + tm_ * D * 4
                + tm_ * th_ * (4 + w_itemsize))

    if mode == "auto":
        # Prefer the resident path (weights loaded once -> MXU-bound) whenever it fits the
        # generation-aware budget, or when H cannot be lane-tiled cleanly.
        mode = ("resident"
                if (resident_bytes(256) <= vmem_budget_bytes or H % 128 != 0)
                else "htiled")

    # Token tile: 256 on the resident path; 512 on the weight-streaming path so the
    # ~tm flops/weight-byte intensity sits above the MXU:HBM ridge (~310 flops/B on v7x,
    # ~240 on v5e) instead of being HBM-bound. Clamp to the (padded) problem size and keep
    # >= 2 M-steps so both v7x TensorCores (dimension_semantics "parallel") get work.
    if tm is None:
        tm = 256 if mode == "resident" else 512
    tm = max(8, min(_round_up(tm, 8), _round_up(M, 8)))
    if M > 8 and _cdiv(M, tm) < 2:
        tm = _round_up(_cdiv(M, 2), 8)

    if mode == "htiled":
        assert H % 128 == 0, "H-tiled path needs a lane-aligned hidden dim"
        if th is None:
            th = _pick_th(H, D, tm, w_itemsize, act_itemsize, vmem_budget_bytes)
        assert H % th == 0 and th % 128 == 0
        # If the x/acc tiles dominate (very large D), shrink the token tile and re-pick th.
        if htiled_bytes(tm, th) > vmem_budget_bytes and tm > 256:
            tm = max(8, min(256, _round_up(M, 8)))
            if M > 8 and _cdiv(M, tm) < 2:
                tm = _round_up(_cdiv(M, 2), 8)
            th = _pick_th(H, D, tm, w_itemsize, act_itemsize, vmem_budget_bytes)

    Mp = _round_up(M, tm)
    x2d = x.reshape(M, D)
    if Mp != M:
        x2d = jnp.pad(x2d, ((0, Mp - M), (0, 0)))   # ragged M: pad, slice output later
    b1_2d = b1.reshape(1, H)
    b2_2d = b2.reshape(1, D)

    flops = 2 * Mp * D * H * 2          # two matmuls
    transcendentals = Mp * H            # one tanh per hidden activation
    bytes_accessed = (2 * Mp * D * act_itemsize
                      + (D * H + H * D + H + D) * w_itemsize)
    cost = pl.CostEstimate(flops=flops, transcendentals=transcendentals,
                           bytes_accessed=bytes_accessed)

    if mode == "resident":
        est = resident_bytes(tm)
        vmem_limit = min(max(int(est * 1.25), 32 * _MiB), cap - vmem_headroom)
        out2d = pl.pallas_call(
            _ff_resident_kernel,
            out_shape=jax.ShapeDtypeStruct((Mp, D), x.dtype),
            grid_spec=pltpu.PrefetchScalarGridSpec(
                num_scalar_prefetch=0,
                grid=(Mp // tm,),
                in_specs=[
                    pl.BlockSpec((tm, D), lambda i: (i, 0)),                     # x tile
                    pl.BlockSpec((D, H), lambda i: (0, 0), **weight_pipeline),   # w1 resident
                    pl.BlockSpec((1, H), lambda i: (0, 0), **weight_pipeline),   # b1
                    pl.BlockSpec((H, D), lambda i: (0, 0), **weight_pipeline),   # w2 resident
                    pl.BlockSpec((1, D), lambda i: (0, 0), **weight_pipeline),   # b2
                ],
                out_specs=pl.BlockSpec((tm, D), lambda i: (i, 0)),
            ),
            compiler_params=pltpu.CompilerParams(
                dimension_semantics=("parallel",),
                vmem_limit_bytes=vmem_limit,
            ),
            cost_estimate=cost,
        )(x2d, w1, b1_2d, w2, b2_2d)
    else:
        est = htiled_bytes(tm, th)
        vmem_limit = min(max(int(est * 1.25), 32 * _MiB), cap - vmem_headroom)
        out2d = pl.pallas_call(
            _ff_htiled_kernel,
            out_shape=jax.ShapeDtypeStruct((Mp, D), x.dtype),
            grid_spec=pltpu.PrefetchScalarGridSpec(
                num_scalar_prefetch=0,
                grid=(Mp // tm, H // th),
                in_specs=[
                    pl.BlockSpec((tm, D), lambda i, j: (i, 0)),   # x tile
                    pl.BlockSpec((D, th), lambda i, j: (0, j)),   # w1 column tile (streamed)
                    pl.BlockSpec((1, th), lambda i, j: (0, j)),   # b1 tile
                    pl.BlockSpec((th, D), lambda i, j: (j, 0)),   # w2 row tile (streamed)
                    pl.BlockSpec((1, D), lambda i, j: (0, 0), **weight_pipeline),  # b2
                ],
                out_specs=pl.BlockSpec((tm, D), lambda i, j: (i, 0)),
                scratch_shapes=[pltpu.VMEM((tm, D), jnp.float32)],
            ),
            compiler_params=pltpu.CompilerParams(
                dimension_semantics=("parallel", "arbitrary"),
                vmem_limit_bytes=vmem_limit,
            ),
            cost_estimate=cost,
        )(x2d, w1, b1_2d, w2, b2_2d)
        # TODO(synk): on v6e, reuse each (w1,w2) H-tile across several M tiles (emit_pipeline
        # restructuring) to cut weight HBM traffic further when this path is unavoidable.

    if Mp != M:
        out2d = out2d[:M]
    return out2d.reshape(B, S, D)


def feedforward_ref(x, w1, b1, w2, b2):
    """Pure-JAX f32 reference matching the PyTorch module semantics."""
    x = x.astype(jnp.float32)
    w1 = w1.astype(jnp.float32)
    b1 = b1.astype(jnp.float32)
    w2 = w2.astype(jnp.float32)
    b2 = b2.astype(jnp.float32)
    h = jnp.einsum("bsd,dh->bsh", x, w1) + b1
    g = _gelu_tanh_f32(h)
    return jnp.einsum("bsh,hd->bsd", g, w2) + b2


if __name__ == "__main__":
    # Small GPT-like config with a lane-aligned width: cfg['emb_dim'] = 128 -> hidden = 512.
    B, S, D = 2, 8, 128
    H = 4 * D

    key = jax.random.PRNGKey(0)
    kx, kw1, kb1, kw2, kb2 = jax.random.split(key, 5)

    x = jax.random.normal(kx, (B, S, D), dtype=jnp.float32)
    # Deterministic synthetic parameters (shapes follow nn.Linear in the module).
    w1 = jax.random.normal(kw1, (D, H), dtype=jnp.float32) * 0.02
    b1 = jax.random.normal(kb1, (H,), dtype=jnp.float32) * 0.02
    w2 = jax.random.normal(kw2, (H, D), dtype=jnp.float32) * 0.02
    b2 = jax.random.normal(kb2, (D,), dtype=jnp.float32) * 0.02

    ref = feedforward_ref(x, w1, b1, w2, b2)

    # Resident-weight Pallas path (fast path: weights VMEM-resident, Buffered(1) specs).
    out_res = feedforward(x, w1, b1, w2, b2, mode="resident")
    jax.block_until_ready(out_res)
    assert out_res.shape == (B, S, D)
    assert jnp.allclose(out_res, ref, atol=5e-4, rtol=5e-4), "resident path mismatch"

    # H-tiled reduction Pallas path (scalable path: weights streamed tile-by-tile, f32 acc).
    out_tiled = feedforward(x, w1, b1, w2, b2, mode="htiled", th=128)
    jax.block_until_ready(out_tiled)
    assert jnp.allclose(out_tiled, ref, atol=5e-4, rtol=5e-4), "H-tiled path mismatch"

    # Mixed precision: bf16 activations/weights on the MXU with f32 accumulation + f32 GELU.
    bf16 = jnp.bfloat16
    out_bf16 = feedforward(x.astype(bf16), w1.astype(bf16), b1.astype(bf16),
                           w2.astype(bf16), b2.astype(bf16))
    jax.block_until_ready(out_bf16)
    assert jnp.allclose(out_bf16.astype(jnp.float32), ref, atol=3e-2, rtol=3e-2), \
        "bf16 path mismatch"

    # Toy emb_dim=32 config (not a multiple of 128): exercises the plain-XLA fallback path.
    Dt, Ht = 32, 128
    kx2, kw3, kb3, kw4, kb4 = jax.random.split(jax.random.PRNGKey(0), 5)
    xt = jax.random.normal(kx2, (B, S, Dt), dtype=jnp.float32)
    w1t = jax.random.normal(kw3, (Dt, Ht), dtype=jnp.float32) * 0.02
    b1t = jax.random.normal(kb3, (Ht,), dtype=jnp.float32) * 0.02
    w2t = jax.random.normal(kw4, (Ht, Dt), dtype=jnp.float32) * 0.02
    b2t = jax.random.normal(kb4, (Dt,), dtype=jnp.float32) * 0.02
    out_toy = feedforward(xt, w1t, b1t, w2t, b2t)
    jax.block_until_ready(out_toy)
    assert jnp.allclose(out_toy, feedforward_ref(xt, w1t, b1t, w2t, b2t),
                        atol=5e-4, rtol=5e-4), "XLA fallback mismatch"

    print("KERNEL_OK")
</pallas_src>

<mosaic_0001>
module attributes {stable_mosaic.version = 11 : i64} {
  func.func @probe(%arg0: i32, %arg1: memref<8x128xf32, #tpu.memory_space<vmem>>, %arg2: memref<8x128xf32, #tpu.memory_space<vmem>>, %arg3: memref<8x128xf32, #tpu.memory_space<vmem>>) attributes {dimension_semantics = [#tpu.dimension_semantics<arbitrary>], iteration_bounds = array<i64: 2>, scalar_prefetch = 0 : i64, scratch_operands = 0 : i64, tpu.core_type = #tpu.core_type<tc>, window_params = [{pipeline_mode = #tpu.pipeline_mode<synchronous>, transform_indices = @transform_0, window_bounds = array<i64: 8, 128>}, {transform_indices = @transform_1, window_bounds = array<i64: 8, 128>}, {transform_indices = @transform_2, window_bounds = array<i64: 8, 128>}]} {
    %c0 = arith.constant 0 : index
    %c0_0 = arith.constant 0 : index
    %0 = vector.load %arg2[%c0, %c0_0] : memref<8x128xf32, #tpu.memory_space<vmem>>, vector<8x128xf32>
    %c0_1 = arith.constant 0 : index
    %c0_2 = arith.constant 0 : index
    %1 = vector.load %arg1[%c0_1, %c0_2] : memref<8x128xf32, #tpu.memory_space<vmem>>, vector<8x128xf32>
    %2 = arith.addf %0, %1 : vector<8x128xf32>
    %c0_3 = arith.constant 0 : index
    %c0_4 = arith.constant 0 : index
    %3 = vector.load %arg3[%c0_3, %c0_4] : memref<8x128xf32, #tpu.memory_space<vmem>>, vector<8x128xf32>
    tpu.vector_store %arg3[%c0_3, %c0_4], %2 {strides = array<i32>} : memref<8x128xf32, #tpu.memory_space<vmem>>, vector<8x128xf32>,
    return
  }
  func.func @transform_0(%arg0: i32) -> (i32, i32) {
    %c0_i32 = arith.constant 0 : i32
    %c0_i32_0 = arith.constant 0 : i32
    %c0_i32_1 = arith.constant 0 : i32
    return %c0_i32, %c0_i32_0 : i32, i32
  }
  func.func @transform_1(%arg0: i32) -> (i32, i32) {
    %c0_i32 = arith.constant 0 : i32
    %c0_i32_0 = arith.constant 0 : i32
    return %arg0, %c0_i32 : i32, i32
  }
  func.func @transform_2(%arg0: i32) -> (i32, i32) {
    %c0_i32 = arith.constant 0 : i32
    %c0_i32_0 = arith.constant 0 : i32
    return %arg0, %c0_i32 : i32, i32
  }
}

module attributes {stable_mosaic.version = 11 : i64} {
  func.func @_ff_resident_kernel(%arg0: i32, %arg1: memref<8x128xf32, #tpu.memory_space<vmem>>, %arg2: memref<128x512xf32, #tpu.memory_space<vmem>>, %arg3: memref<1x512xf32, #tpu.memory_space<vmem>>, %arg4: memref<512x128xf32, #tpu.memory_space<vmem>>, %arg5: memref<1x128xf32, #tpu.memory_space<vmem>>, %arg6: memref<8x128xf32, #tpu.memory_space<vmem>>) attributes {dimension_semantics = [#tpu.dimension_semantics<parallel>], iteration_bounds = array<i64: 2>, scalar_prefetch = 0 : i64, scratch_operands = 0 : i64, tpu.core_type = #tpu.core_type<tc>, window_params = [{transform_indices = @transform_0, window_bounds = array<i64: 8, 128>}, {pipeline_mode = #tpu.pipeline_mode<synchronous>, transform_indices = @transform_1, window_bounds = array<i64: 128, 512>}, {pipeline_mode = #tpu.pipeline_mode<synchronous>, transform_indices = @transform_2, window_bounds = array<i64: 1, 512>}, {pipeline_mode = #tpu.pipeline_mode<synchronous>, transform_indices = @transform_3, window_bounds = array<i64: 512, 128>}, {pipeline_mode = #tpu.pipeline_mode<synchronous>, transform_indices = @transform_4, window_bounds = array<i64: 1, 128>}, {transform_indices = @transform_5, window_bounds = array<i64: 8, 128>}]} {
    %c0 = arith.constant 0 : index
    %c0_0 = arith.constant 0 : index
    %0 = vector.load %arg1[%c0, %c0_0] : memref<8x128xf32, #tpu.memory_space<vmem>>, vector<8x128xf32>
    %c0_1 = arith.constant 0 : index
    %c0_2 = arith.constant 0 : index
    %1 = vector.load %arg2[%c0_1, %c0_2] : memref<128x512xf32, #tpu.memory_space<vmem>>, vector<128x512xf32>
    %cst = arith.constant dense<0.000000e+00> : vector<8x512xf32>
    %2 = tpu.matmul %0, %1, %cst {dimension_numbers = #tpu.dot_dimension_numbers<[1], [0], [0], [1], [0, 0, 1, 1], [], []>} : vector<8x128xf32>, vector<128x512xf32>, vector<8x512xf32> -> vector<8x512xf32>
    %c0_3 = arith.constant 0 : index
    %c0_4 = arith.constant 0 : index
    %3 = vector.load %arg3[%c0_3, %c0_4] : memref<1x512xf32, #tpu.memory_space<vmem>>, vector<1x512xf32>
    %4 = vector.broadcast %3 : vector<1x512xf32> to vector<8x512xf32>
    %5 = arith.addf %2, %4 : vector<8x512xf32>
    %cst_5 = arith.constant 5.000000e-01 : f32
    %6 = vector.broadcast %cst_5 : f32 to vector<8x512xf32>
    %7 = arith.mulf %6, %5 : vector<8x512xf32>
    %cst_6 = arith.constant 0.797884583 : f32
    %8 = vector.broadcast %cst_6 : f32 to vector<8x512xf32>
    %9 = arith.mulf %8, %5 : vector<8x512xf32>
    %cst_7 = arith.constant 4.471500e-02 : f32
    %10 = vector.broadcast %cst_7 : f32 to vector<8x512xf32>
    %11 = arith.mulf %10, %5 : vector<8x512xf32>
    %12 = arith.mulf %11, %5 : vector<8x512xf32>
    %cst_8 = arith.constant 1.000000e+00 : f32
    %13 = vector.broadcast %cst_8 : f32 to vector<8x512xf32>
    %14 = arith.addf %13, %12 : vector<8x512xf32>
    %15 = arith.mulf %9, %14 : vector<8x512xf32>
    %16 = math.tanh %15 : vector<8x512xf32>
    %cst_9 = arith.constant 1.000000e+00 : f32
    %17 = vector.broadcast %cst_9 : f32 to vector<8x512xf32>
    %18 = arith.addf %17, %16 : vector<8x512xf32>
    %19 = arith.mulf %7, %18 : vector<8x512xf32>
    %c0_10 = arith.constant 0 : index
    %c0_11 = arith.constant 0 : index
    %20 = vector.load %arg4[%c0_10, %c0_11] : memref<512x128xf32, #tpu.memory_space<vmem>>, vector<512x128xf32>
    %cst_12 = arith.constant dense<0.000000e+00> : vector<8x128xf32>
    %21 = tpu.matmul %19, %20, %cst_12 {dimension_numbers = #tpu.dot_dimension_numbers<[1], [0], [0], [1], [0, 0, 1, 1], [], []>} : vector<8x512xf32>, vector<512x128xf32>, vector<8x128xf32> -> vector<8x128xf32>
    %c0_13 = arith.constant 0 : index
    %c0_14 = arith.constant 0 : index
    %22 = vector.load %arg5[%c0_13, %c0_14] : memref<1x128xf32, #tpu.memory_space<vmem>>, vector<1x128xf32>
    %23 = vector.broadcast %22 : vector<1x128xf32> to vector<8x128xf32>
    %24 = arith.addf %21, %23 : vector<8x128xf32>
    %c0_15 = arith.constant 0 : index
    %c0_16 = arith.constant 0 : index
    %25 = vector.load %arg6[%c0_15, %c0_16] : memref<8x128xf32, #tpu.memory_space<vmem>>, vector<8x128xf32>
    tpu.vector_store %arg6[%c0_15, %c0_16], %24 {strides = array<i32>} : memref<8x128xf32, #tpu.memory_space<vmem>>, vector<8x128xf32>,
    return
  }
  func.func @transform_0(%arg0: i32) -> (i32, i32) {
    %c0_i32 = arith.constant 0 : i32
    %c0_i32_0 = arith.constant 0 : i32
    return %arg0, %c0_i32 : i32, i32
  }
  func.func @transform_1(%arg0: i32) -> (i32, i32) {
    %c0_i32 = arith.constant 0 : i32
    %c0_i32_0 = arith.constant 0 : i32
    %c0_i32_1 = arith.constant 0 : i32
    return %c0_i32, %c0_i32_0 : i32, i32
  }
  func.func @transform_2(%arg0: i32) -> (i32, i32) {
    %c0_i32 = arith.constant 0 : i32
    %c0_i32_0 = arith.constant 0 : i32
    %c0_i32_1 = arith.constant 0 : i32
    return %c0_i32, %c0_i32_0 : i32, i32
  }
  func.func @transform_3(%arg0: i32) -> (i32, i32) {
    %c0_i32 = arith.constant 0 : i32
    %c0_i32_0 = arith.constant 0 : i32
    %c0_i32_1 = arith.constant 0 : i32
    return %c0_i32, %c0_i32_0 : i32, i32
  }
  func.func @transform_4(%arg0: i32) -> (i32, i32) {
    %c0_i32 = arith.constant 0 : i32
    %c0_i32_0 = arith.constant 0 : i32
    %c0_i32_1 = arith.constant 0 : i32
    return %c0_i32, %c0_i32_0 : i32, i32
  }
  func.func @transform_5(%arg0: i32) -> (i32, i32) {
    %c0_i32 = arith.constant 0 : i32
    %c0_i32_0 = arith.constant 0 : i32
    return %arg0, %c0_i32 : i32, i32
  }
}

</mosaic_0001>

<llo_original>
// kernel: tpu_custom_call.1
$region0: #{tpu_custom_call.1}
  #allocation0 [shape = 'u32[]', space=smem, size = 0x4, offset = 0x4, fixed_abs, tag = 'smem constant byte address 0x4 - core index']
  #allocation1 [shape = 'u32[72,128]{1,0:T(1,128)}', space=vmem, size = 0x9000, scoped, tag = 'internal scratch']
  %s0 = inlined_call_operand.hbm [shape: f32[8,128], index: 0, kind: input, shape index: {}]
  %s1 = inlined_call_operand.hbm [shape: f32[16,128], index: 1, kind: input, shape index: {}]
  %s2 = inlined_call_operand.hbm [shape: f32[16,128], index: 2, kind: output, shape index: {}]
  %s3 = sld [smem:[#allocation0]]
  $region49: #{tpu_custom_call.1} parent=0
    _
  %s5 = ssub.s32 1, %s3
  %s6 = scalar_select 0, %s5, %s3
  $region1: #{tpu_custom_call.1} parent=0
    #allocation2 [shape = 'u8[4096]{0}', space=vmem, size = 0x1000, scoped, tag = 'input window, operand 0, single buffered']
    #allocation3 [shape = 's32[2]{0}', space=sflag, size = 0x8, scoped, tag = 'scoped memory for tpu_custom_call.1']
    #allocation4 [shape = 's32[2]{0}', space=sflag, size = 0x8, scoped, tag = 'scoped memory for tpu_custom_call.1']
    #allocation5 [shape = 'u8[8192]{0}', space=vmem, size = 0x2000, scoped, tag = 'input window, operand 1']
    #allocation6 [shape = 's32[2]{0}', space=sflag, size = 0x8, scoped, tag = 'scoped memory for tpu_custom_call.1']
    #allocation7 [shape = 'u8[8192]{0}', space=vmem, size = 0x2000, scoped, tag = 'output window, operand 0']
    %7 = vsyncpa [#allocation3], 0
    %8 = vsyncpa [#allocation6], 0
    %s9 = scalar_lea.sflag [#allocation6], 1
    %10 = vsyncpa %s9, 0
    %11 = vsyncpa [#allocation4], 0
    %s12 = scalar_lea.sflag [#allocation4], 1
    %13 = vsyncpa %s12, 0
    loop: start=0, step=1, limit=4
    $region2: #{tpu_custom_call.1} parent=1 // loop_pre_header
      _
    $region3: #{tpu_custom_call.1} parent=1 // loop_header
      %s15 = sphi 0, %s19
      %p16 = scmp.ge.s32.totalorder %s15, 4
      %s23 = sphi 0, %s23
      %s25 = sphi 0, %s23
      %s26 = sphi 0, %s25
      %s40 = sphi 0, %s26
      %s46 = sphi 0, %s48
      %s49 = sphi 0, %s46
      %s50 = sphi 0, %s49
      %s66 = sphi 0, %s50
      %s72 = sphi 0, %s74
      %s75 = sphi 0, %s72
      %s76 = sphi 0, %s75
      %s92 = sphi 0, %s76
    $region4: #{tpu_custom_call.1} parent=1 // loop_header_branch
      %18 = sbr.rel (%p16) target = $region8
    $region5: #{tpu_custom_call.1} parent=1 // loop_body
      %s20 = ssub.s32 %s15, 1
      %s21 = ssub.s32 %s15, 2
      %s22 = sadd.s32 %s15, 1
      %s24 = sadd.s32 %s23, 1
      %p27 = scmp.eq.s32.totalorder %s15, 1
      %p28 = scmp.ne.s32.totalorder %s23, %s25
      %p29 = scmp.eq.s32.totalorder %s15, 0
      %p30 = por %p28, %p29
      %p31 = scmp.ne.s32.totalorder %s23, %s25
      %p32 = scmp.eq.s32.totalorder %s20, 1
      %p33 = por %p31, %p32
      %p34 = scmp.ne.s32.totalorder %s25, %s26
      %p35 = scmp.eq.s32.totalorder %s20, 0
      %p36 = por %p34, %p35
      %p37 = scmp.ne.s32.totalorder %s25, %s26
      %p38 = scmp.eq.s32.totalorder %s21, 1
      %p39 = por %p37, %p38
      %p41 = scmp.ne.s32.totalorder %s26, %s40
      %p42 = scmp.eq.s32.totalorder %s21, 0
      %p43 = por %p41, %p42
      %s44 = ssub.s32 %s15, %s22
      %p45 = scmp.eq.s32.totalorder %s44, 0
      %s47 = sadd.s32 %s46, 1
      %s48 = scalar_select %p45, %s46, %s47
      %p51 = pneg %p45
      %p52 = scmp.eq.s32.totalorder %s15, 1
      %p53 = por %p51, %p52
      %p54 = scmp.ne.s32.totalorder %s46, %s49
      %p55 = scmp.eq.s32.totalorder %s15, 0
      %p56 = por %p54, %p55
      %p57 = scmp.ne.s32.totalorder %s46, %s49
      %p58 = scmp.eq.s32.totalorder %s20, 1
      %p59 = por %p57, %p58
      %p60 = scmp.ne.s32.totalorder %s49, %s50
      %p61 = scmp.eq.s32.totalorder %s20, 0
      %p62 = por %p60, %p61
      %p63 = scmp.ne.s32.totalorder %s49, %s50
      %p64 = scmp.eq.s32.totalorder %s21, 1
      %p65 = por %p63, %p64
      %p67 = scmp.ne.s32.totalorder %s50, %s66
      %p68 = scmp.eq.s32.totalorder %s21, 0
      %p69 = por %p67, %p68
      %s70 = ssub.s32 %s15, %s22
      %p71 = scmp.eq.s32.totalorder %s70, 0
      %s73 = sadd.s32 %s72, 1
      %s74 = scalar_select %p71, %s72, %s73
      %p77 = pneg %p71
      %p78 = scmp.eq.s32.totalorder %s15, 1
      %p79 = por %p77, %p78
      %p80 = scmp.ne.s32.totalorder %s72, %s75
      %p81 = scmp.eq.s32.totalorder %s15, 0
      %p82 = por %p80, %p81
      %p83 = scmp.ne.s32.totalorder %s72, %s75
      %p84 = scmp.eq.s32.totalorder %s20, 1
      %p85 = por %p83, %p84
      %p86 = scmp.ne.s32.totalorder %s75, %s76
      %p87 = scmp.eq.s32.totalorder %s20, 0
      %p88 = por %p86, %p87
      %p89 = scmp.ne.s32.totalorder %s75, %s76
      %p90 = scmp.eq.s32.totalorder %s21, 1
      %p91 = por %p89, %p90
      %p93 = scmp.ne.s32.totalorder %s76, %s92
      %p94 = scmp.eq.s32.totalorder %s21, 0
      %p95 = por %p93, %p94
      %p96 = scmp.le.s32.totalorder 1, %s15
      %p97 = scmp.lt.s32.totalorder %s15, 3
      %p98 = pnand %p96, %p97
      %p99 = pneg %p98
      // Predicated region
      $region9: #{tpu_custom_call.1} parent=5 // pred_check
        _
      $region10: #{tpu_custom_call.1} parent=5 // pred_check_branch
        %101 = sbr.rel (%p98) target = $region12
      $region11: #{tpu_custom_call.1} parent=5 // pred_region
        %s102 = ssub.s32 %s15, 1
        // Predicated region
        $region13: #{tpu_custom_call.1} parent=11 // pred_check
          %p103 = pneg %p36
        $region14: #{tpu_custom_call.1} parent=11 // pred_check_branch
          %105 = sbr.rel (%p103) target = $region16
        $region15: #{tpu_custom_call.1} parent=11 // pred_region
          %107 = vsyncadd [#allocation3], 0
          %s109 = sshll.u32 %s0, 4
          %s110 = int_to_ptr.hbm [resolvable:$true] %s109
          %s111 = sshll.u32 [#allocation2], 4
          %s112 = int_to_ptr.vmem [resolvable:$true] %s111
          %114 = dma.hbm_to_vmem [thread:$0]  %s110, 128, %s112, [#allocation3]
        $region16: #{tpu_custom_call.1} parent=11 // pred_fallthru
          _
      $region12: #{tpu_custom_call.1} parent=5 // pred_fallthru
        _
      %p115 = scmp.lt.s32.totalorder %s15, 2
      // Predicated region
      $region17: #{tpu_custom_call.1} parent=5 // pred_check
        %p116 = pneg %p115
      $region18: #{tpu_custom_call.1} parent=5 // pred_check_branch
        %118 = sbr.rel (%p116) target = $region20
      $region19: #{tpu_custom_call.1} parent=5 // pred_region
        // Predicated region
        $region21: #{tpu_custom_call.1} parent=19 // pred_check
          %p119 = pneg %p56
        $region22: #{tpu_custom_call.1} parent=19 // pred_check_branch
          %121 = sbr.rel (%p119) target = $region24
        $region23: #{tpu_custom_call.1} parent=19 // pred_region
          %s122 = sand.u32 %s46, 1
          %s123 = scalar_lea.sflag [#allocation6], %s122
          %s124 = sand.u32 %s46, 1
          %s125 = smul.addr %s124, 8
          %s126 = scalar_lea.vmem [#allocation5], %s125
          %128 = vsyncadd %s123, 0
          %s129 = smul.addr %s15, 8
          %s130 = scalar_lea.hbm %s1, %s129
          %s132 = sshll.u32 %s130, 4
          %s133 = int_to_ptr.hbm [resolvable:$true] %s132
          %s134 = sshll.u32 %s126, 4
          %s135 = int_to_ptr.vmem [resolvable:$true] %s134
          %137 = dma.hbm_to_vmem [thread:$0]  %s133, 128, %s135, %s123
        $region24: #{tpu_custom_call.1} parent=19 // pred_fallthru
          _
      $region20: #{tpu_custom_call.1} parent=5 // pred_fallthru
        _
      %p138 = scmp.le.s32.totalorder 1, %s15
      %p139 = scmp.lt.s32.totalorder %s15, 3
      %p140 = pnand %p138, %p139
      %p141 = pneg %p140
      // Predicated region
      $region25: #{tpu_custom_call.1} parent=5 // pred_check
        _
      $region26: #{tpu_custom_call.1} parent=5 // pred_check_branch
        %143 = sbr.rel (%p140) target = $region28
      $region27: #{tpu_custom_call.1} parent=5 // pred_region
        %s144 = ssub.s32 %s15, 1
        // Predicated region
        $region29: #{tpu_custom_call.1} parent=27 // pred_check
          %p145 = pneg %p36
        $region30: #{tpu_custom_call.1} parent=27 // pred_check_branch
          %147 = sbr.rel (%p145) target = $region32
        $region31: #{tpu_custom_call.1} parent=27 // pred_region
          %149 = dma.done [#allocation3], 128
        $region32: #{tpu_custom_call.1} parent=27 // pred_fallthru
          _
        %s150 = sand.u32 %s49, 1
        %s151 = scalar_lea.sflag [#allocation6], %s150
        %s152 = sand.u32 %s49, 1
        %s153 = smul.addr %s152, 8
        %s154 = scalar_lea.vmem [#allocation5], %s153
        // Predicated region
        $region33: #{tpu_custom_call.1} parent=27 // pred_check
          %p155 = pneg %p62
        $region34: #{tpu_custom_call.1} parent=27 // pred_check_branch
          %157 = sbr.rel (%p155) target = $region36
        $region35: #{tpu_custom_call.1} parent=27 // pred_region
          %159 = dma.done %s151, 128
        $region36: #{tpu_custom_call.1} parent=27 // pred_fallthru
          _
        %p160 = pneg %p36
        %p161 = pneg %p33
        %s162 = sand.u32 %s49, 1
        %s163 = scalar_lea.sflag [#allocation6], %s162
        %s164 = sand.u32 %s49, 1
        %s165 = smul.addr %s164, 8
        %s166 = scalar_lea.vmem [#allocation5], %s165
        %p167 = pneg %p62
        %p168 = pneg %p59
        %p169 = pneg %p88
        %p170 = pneg %p85
        %s171 = sand.u32 %s75, 1
        %s172 = scalar_lea.sflag [#allocation4], %s171
        %s173 = sand.u32 %s75, 1
        %s174 = smul.addr %s173, 8
        %s175 = scalar_lea.vmem [#allocation7], %s174
        %v176 = vld [vmem:[%s154] sm:$0xff]
        %v177 = vld [vmem:[#allocation2] sm:$0xff]
        %v178 = vadd.f32 %v176, %v177
        %179 = vst [vmem:[%s175] sm:$0xff] %v178
        %s180 = sand.u32 %s75, 1
        %s181 = scalar_lea.sflag [#allocation4], %s180
        %s182 = sand.u32 %s75, 1
        %s183 = smul.addr %s182, 8
        %s184 = scalar_lea.vmem [#allocation7], %s183
        // Predicated region
        $region37: #{tpu_custom_call.1} parent=27 // pred_check
          %p185 = pneg %p85
        $region38: #{tpu_custom_call.1} parent=27 // pred_check_branch
          %187 = sbr.rel (%p185) target = $region40
        $region39: #{tpu_custom_call.1} parent=27 // pred_region
          %189 = vsyncadd %s181, 0
          %s190 = smul.addr %s20, 8
          %s191 = scalar_lea.hbm %s2, %s190
          %s193 = sshll.u32 %s184, 4
          %s194 = int_to_ptr.vmem [resolvable:$true] %s193
          %s195 = sshll.u32 %s191, 4
          %s196 = int_to_ptr.hbm [resolvable:$true] %s195
          %198 = dma.vmem_to_hbm [thread:$0]  %s194, 128, %s196, %s181
        $region40: #{tpu_custom_call.1} parent=27 // pred_fallthru
          _
      $region28: #{tpu_custom_call.1} parent=5 // pred_fallthru
        _
      %p199 = scmp.le.s32.totalorder 2, %s15
      // Predicated region
      $region41: #{tpu_custom_call.1} parent=5 // pred_check
        %p200 = pneg %p199
      $region42: #{tpu_custom_call.1} parent=5 // pred_check_branch
        %202 = sbr.rel (%p200) target = $region44
      $region43: #{tpu_custom_call.1} parent=5 // pred_region
        %s203 = ssub.s32 %s15, 2
        // Predicated region
        $region45: #{tpu_custom_call.1} parent=43 // pred_check
          %p204 = pneg %p91
        $region46: #{tpu_custom_call.1} parent=43 // pred_check_branch
          %206 = sbr.rel (%p204) target = $region48
        $region47: #{tpu_custom_call.1} parent=43 // pred_region
          %s207 = sand.u32 %s76, 1
          %s208 = scalar_lea.sflag [#allocation4], %s207
          %s209 = sand.u32 %s76, 1
          %s210 = smul.addr %s209, 8
          %s211 = scalar_lea.vmem [#allocation7], %s210
          %213 = dma.done %s208, 128
        $region48: #{tpu_custom_call.1} parent=43 // pred_fallthru
          _
      $region44: #{tpu_custom_call.1} parent=5 // pred_fallthru
        _
    $region6: #{tpu_custom_call.1} parent=1 // loop_footer
      %s19 = sadd.s32 1, %s15
    $region7: #{tpu_custom_call.1} parent=1 // loop_footer_branch
      %14 = sbr.rel target = $region3
    $region8: #{tpu_custom_call.1} parent=1 // loop_exit
      _
    %214 = vsyncpa [#allocation3], 1
    %s215 = scalar_lea.sflag [#allocation3], 1
    %216 = vsyncpa %s215, 1
    %217 = vsyncpa [#allocation6], 1
    %s218 = scalar_lea.sflag [#allocation6], 1
    %219 = vsyncpa %s218, 1
    %220 = vsyncpa [#allocation4], 1
    %s221 = scalar_lea.sflag [#allocation4], 1
    %222 = vsyncpa %s221, 1

// kernel: tpu_custom_call.1
$region0: #{tpu_custom_call.1}
  #allocation0 [shape = 'u32[]', space=smem, size = 0x4, offset = 0x4, fixed_abs, tag = 'smem constant byte address 0x4 - core index']
  #allocation1 [shape = 'u32[72,128]{1,0:T(1,128)}', space=vmem, size = 0x9000, scoped, tag = 'internal scratch']
  %s0 = inlined_call_operand.hbm [shape: f32[16,128], index: 0, kind: input, shape index: {}]
  %s1 = inlined_call_operand.hbm [shape: f32[128,512], index: 1, kind: input, shape index: {}]
  %s2 = inlined_call_operand.hbm [shape: f32[1,512], index: 2, kind: input, shape index: {}]
  %s3 = inlined_call_operand.hbm [shape: f32[512,128], index: 3, kind: input, shape index: {}]
  %s4 = inlined_call_operand.vmem [shape: f32[1,128], index: 4, kind: input, shape index: {}]
  %s5 = inlined_call_operand.hbm [shape: f32[16,128], index: 5, kind: output, shape index: {}]
  %s6 = sld [smem:[#allocation0]]
  $region69: #{tpu_custom_call.1} parent=0
    _
  %s8 = ssub.s32 1, %s6
  %s9 = scalar_select 0, %s8, %s6
  $region1: #{tpu_custom_call.1} parent=0
    #allocation2 [shape = 'u8[8192]{0}', space=vmem, size = 0x2000, scoped, tag = 'input window, operand 0']
    #allocation3 [shape = 's32[2]{0}', space=sflag, size = 0x8, scoped, tag = 'scoped memory for tpu_custom_call.1']
    #allocation4 [shape = 's32[2]{0}', space=sflag, size = 0x8, scoped, tag = 'scoped memory for tpu_custom_call.1']
    #allocation5 [shape = 'u8[262144]{0}', space=vmem, size = 0x40000, scoped, tag = 'input window, operand 1, single buffered']
    #allocation6 [shape = 's32[1]{0}', space=sflag, size = 0x4, scoped, tag = 'scoped memory for tpu_custom_call.1']
    #allocation7 [shape = 'u8[2048]{0}', space=vmem, size = 0x800, scoped, tag = 'input window, operand 2, single buffered']
    #allocation8 [shape = 'u8[262144]{0}', space=vmem, size = 0x40000, scoped, tag = 'input window, operand 3, single buffered']
    #allocation9 [shape = 's32[1]{0}', space=sflag, size = 0x4, scoped, tag = 'scoped memory for tpu_custom_call.1']
    #allocation10 [shape = 'u8[8192]{0}', space=vmem, size = 0x2000, scoped, tag = 'output window, operand 0']
    %10 = vsyncpa [#allocation3], 0
    %s11 = scalar_lea.sflag [#allocation3], 1
    %12 = vsyncpa %s11, 0
    %13 = vsyncpa [#allocation6], 0
    %14 = vsyncpa [#allocation9], 0
    %15 = vsyncpa [#allocation4], 0
    %s16 = scalar_lea.sflag [#allocation4], 1
    %17 = vsyncpa %s16, 0
    loop: start=0, step=1, limit=4
    $region2: #{tpu_custom_call.1} parent=1 // loop_pre_header
      _
    $region3: #{tpu_custom_call.1} parent=1 // loop_header
      %s19 = sphi 0, %s23
      %p20 = scmp.ge.s32.totalorder %s19, 4
      %s29 = sphi 0, %s31
      %s32 = sphi 0, %s29
      %s33 = sphi 0, %s32
      %s49 = sphi 0, %s33
      %s53 = sphi 0, %s53
      %s55 = sphi 0, %s53
      %s56 = sphi 0, %s55
      %s70 = sphi 0, %s56
      %s74 = sphi 0, %s74
      %s76 = sphi 0, %s74
      %s77 = sphi 0, %s76
      %s91 = sphi 0, %s77
      %s95 = sphi 0, %s95
      %s97 = sphi 0, %s95
      %s98 = sphi 0, %s97
      %s112 = sphi 0, %s98
      %s116 = sphi 0, %s116
      %s118 = sphi 0, %s116
      %s119 = sphi 0, %s118
      %s133 = sphi 0, %s119
      %s139 = sphi 0, %s141
      %s142 = sphi 0, %s139
      %s143 = sphi 0, %s142
      %s159 = sphi 0, %s143
    $region4: #{tpu_custom_call.1} parent=1 // loop_header_branch
      %22 = sbr.rel (%p20) target = $region8
    $region5: #{tpu_custom_call.1} parent=1 // loop_body
      %s24 = ssub.s32 %s19, 1
      %s25 = ssub.s32 %s19, 2
      %s26 = sadd.s32 %s19, 1
      %s27 = ssub.s32 %s19, %s26
      %p28 = scmp.eq.s32.totalorder %s27, 0
      %s30 = sadd.s32 %s29, 1
      %s31 = scalar_select %p28, %s29, %s30
      %p34 = pneg %p28
      %p35 = scmp.eq.s32.totalorder %s19, 1
      %p36 = por %p34, %p35
      %p37 = scmp.ne.s32.totalorder %s29, %s32
      %p38 = scmp.eq.s32.totalorder %s19, 0
      %p39 = por %p37, %p38
      %p40 = scmp.ne.s32.totalorder %s29, %s32
      %p41 = scmp.eq.s32.totalorder %s24, 1
      %p42 = por %p40, %p41
      %p43 = scmp.ne.s32.totalorder %s32, %s33
      %p44 = scmp.eq.s32.totalorder %s24, 0
      %p45 = por %p43, %p44
      %p46 = scmp.ne.s32.totalorder %s32, %s33
      %p47 = scmp.eq.s32.totalorder %s25, 1
      %p48 = por %p46, %p47
      %p50 = scmp.ne.s32.totalorder %s33, %s49
      %p51 = scmp.eq.s32.totalorder %s25, 0
      %p52 = por %p50, %p51
      %s54 = sadd.s32 %s53, 1
      %p57 = scmp.eq.s32.totalorder %s19, 1
      %p58 = scmp.ne.s32.totalorder %s53, %s55
      %p59 = scmp.eq.s32.totalorder %s19, 0
      %p60 = por %p58, %p59
      %p61 = scmp.ne.s32.totalorder %s53, %s55
      %p62 = scmp.eq.s32.totalorder %s24, 1
      %p63 = por %p61, %p62
      %p64 = scmp.ne.s32.totalorder %s55, %s56
      %p65 = scmp.eq.s32.totalorder %s24, 0
      %p66 = por %p64, %p65
      %p67 = scmp.ne.s32.totalorder %s55, %s56
      %p68 = scmp.eq.s32.totalorder %s25, 1
      %p69 = por %p67, %p68
      %p71 = scmp.ne.s32.totalorder %s56, %s70
      %p72 = scmp.eq.s32.totalorder %s25, 0
      %p73 = por %p71, %p72
      %s75 = sadd.s32 %s74, 1
      %p78 = scmp.eq.s32.totalorder %s19, 1
      %p79 = scmp.ne.s32.totalorder %s74, %s76
      %p80 = scmp.eq.s32.totalorder %s19, 0
      %p81 = por %p79, %p80
      %p82 = scmp.ne.s32.totalorder %s74, %s76
      %p83 = scmp.eq.s32.totalorder %s24, 1
      %p84 = por %p82, %p83
      %p85 = scmp.ne.s32.totalorder %s76, %s77
      %p86 = scmp.eq.s32.totalorder %s24, 0
      %p87 = por %p85, %p86
      %p88 = scmp.ne.s32.totalorder %s76, %s77
      %p89 = scmp.eq.s32.totalorder %s25, 1
      %p90 = por %p88, %p89
      %p92 = scmp.ne.s32.totalorder %s77, %s91
      %p93 = scmp.eq.s32.totalorder %s25, 0
      %p94 = por %p92, %p93
      %s96 = sadd.s32 %s95, 1
      %p99 = scmp.eq.s32.totalorder %s19, 1
      %p100 = scmp.ne.s32.totalorder %s95, %s97
      %p101 = scmp.eq.s32.totalorder %s19, 0
      %p102 = por %p100, %p101
      %p103 = scmp.ne.s32.totalorder %s95, %s97
      %p104 = scmp.eq.s32.totalorder %s24, 1
      %p105 = por %p103, %p104
      %p106 = scmp.ne.s32.totalorder %s97, %s98
      %p107 = scmp.eq.s32.totalorder %s24, 0
      %p108 = por %p106, %p107
      %p109 = scmp.ne.s32.totalorder %s97, %s98
      %p110 = scmp.eq.s32.totalorder %s25, 1
      %p111 = por %p109, %p110
      %p113 = scmp.ne.s32.totalorder %s98, %s112
      %p114 = scmp.eq.s32.totalorder %s25, 0
      %p115 = por %p113, %p114
      %s117 = sadd.s32 %s116, 1
      %p120 = scmp.eq.s32.totalorder %s19, 1
      %p121 = scmp.ne.s32.totalorder %s116, %s118
      %p122 = scmp.eq.s32.totalorder %s19, 0
      %p123 = por %p121, %p122
      %p124 = scmp.ne.s32.totalorder %s116, %s118
      %p125 = scmp.eq.s32.totalorder %s24, 1
      %p126 = por %p124, %p125
      %p127 = scmp.ne.s32.totalorder %s118, %s119
      %p128 = scmp.eq.s32.totalorder %s24, 0
      %p129 = por %p127, %p128
      %p130 = scmp.ne.s32.totalorder %s118, %s119
      %p131 = scmp.eq.s32.totalorder %s25, 1
      %p132 = por %p130, %p131
      %p134 = scmp.ne.s32.totalorder %s119, %s133
      %p135 = scmp.eq.s32.totalorder %s25, 0
      %p136 = por %p134, %p135
      %s137 = ssub.s32 %s19, %s26
      %p138 = scmp.eq.s32.totalorder %s137, 0
      %s140 = sadd.s32 %s139, 1
      %s141 = scalar_select %p138, %s139, %s140
      %p144 = pneg %p138
      %p145 = scmp.eq.s32.totalorder %s19, 1
      %p146 = por %p144, %p145
      %p147 = scmp.ne.s32.totalorder %s139, %s142
      %p148 = scmp.eq.s32.totalorder %s19, 0
      %p149 = por %p147, %p148
      %p150 = scmp.ne.s32.totalorder %s139, %s142
      %p151 = scmp.eq.s32.totalorder %s24, 1
      %p152 = por %p150, %p151
      %p153 = scmp.ne.s32.totalorder %s142, %s143
      %p154 = scmp.eq.s32.totalorder %s24, 0
      %p155 = por %p153, %p154
      %p156 = scmp.ne.s32.totalorder %s142, %s143
      %p157 = scmp.eq.s32.totalorder %s25, 1
      %p158 = por %p156, %p157
      %p160 = scmp.ne.s32.totalorder %s143, %s159
      %p161 = scmp.eq.s32.totalorder %s25, 0
      %p162 = por %p160, %p161
      %p163 = scmp.le.s32.totalorder 1, %s19
      %p164 = scmp.lt.s32.totalorder %s19, 3
      %p165 = pnand %p163, %p164
      %p166 = pneg %p165
      // Predicated region
      $region9: #{tpu_custom_call.1} parent=5 // pred_check
        _
      $region10: #{tpu_custom_call.1} parent=5 // pred_check_branch
        %168 = sbr.rel (%p165) target = $region12
      $region11: #{tpu_custom_call.1} parent=5 // pred_region
        %s169 = ssub.s32 %s19, 1
        // Predicated region
        $region13: #{tpu_custom_call.1} parent=11 // pred_check
          %p170 = pneg %p66
        $region14: #{tpu_custom_call.1} parent=11 // pred_check_branch
          %172 = sbr.rel (%p170) target = $region16
        $region15: #{tpu_custom_call.1} parent=11 // pred_region
          %174 = vsyncadd [#allocation6], 0
          %s175 = sshll.u32 %s1, 4
          %s176 = int_to_ptr.hbm [resolvable:$true] %s175
          %s177 = sshll.u32 [#allocation5], 4
          %s178 = int_to_ptr.vmem [resolvable:$true] %s177
          %183 = dma.hbm_to_vmem [thread:$0]  %s176, 8192, %s178, [#allocation6], 512, 512, 32
        $region16: #{tpu_custom_call.1} parent=11 // pred_fallthru
          _
        // Predicated region
        $region17: #{tpu_custom_call.1} parent=11 // pred_check
          %p184 = pneg %p87
        $region18: #{tpu_custom_call.1} parent=11 // pred_check_branch
          %186 = sbr.rel (%p184) target = $region20
        $region19: #{tpu_custom_call.1} parent=11 // pred_region
          %188 = vsyncadd [#allocation6], 0
          %s190 = sshll.u32 %s2, 4
          %s191 = int_to_ptr.hbm [resolvable:$true] %s190
          %s192 = sshll.u32 [#allocation7], 4
          %s193 = int_to_ptr.vmem [resolvable:$true] %s192
          %195 = dma.hbm_to_vmem [thread:$0]  %s191, 64, %s193, [#allocation6]
        $region20: #{tpu_custom_call.1} parent=11 // pred_fallthru
          _
        // Predicated region
        $region21: #{tpu_custom_call.1} parent=11 // pred_check
          %p196 = pneg %p108
        $region22: #{tpu_custom_call.1} parent=11 // pred_check_branch
          %198 = sbr.rel (%p196) target = $region24
        $region23: #{tpu_custom_call.1} parent=11 // pred_region
          %200 = vsyncadd [#allocation9], 0
          %s201 = sshll.u32 %s3, 4
          %s202 = int_to_ptr.hbm [resolvable:$true] %s201
          %s203 = sshll.u32 [#allocation8], 4
          %s204 = int_to_ptr.vmem [resolvable:$true] %s203
          %209 = dma.hbm_to_vmem [thread:$0]  %s202, 8192, %s204, [#allocation9], 128, 128, 8
        $region24: #{tpu_custom_call.1} parent=11 // pred_fallthru
          _
        // Predicated region
        $region25: #{tpu_custom_call.1} parent=11 // pred_check
          %p210 = pneg %p129
        $region26: #{tpu_custom_call.1} parent=11 // pred_check_branch
          %212 = sbr.rel (%p210) target = $region28
        $region27: #{tpu_custom_call.1} parent=11 // pred_region
          _
        $region28: #{tpu_custom_call.1} parent=11 // pred_fallthru
          _
      $region12: #{tpu_custom_call.1} parent=5 // pred_fallthru
        _
      %p213 = scmp.lt.s32.totalorder %s19, 2
      // Predicated region
      $region29: #{tpu_custom_call.1} parent=5 // pred_check
        %p214 = pneg %p213
      $region30: #{tpu_custom_call.1} parent=5 // pred_check_branch
        %216 = sbr.rel (%p214) target = $region32
      $region31: #{tpu_custom_call.1} parent=5 // pred_region
        // Predicated region
        $region33: #{tpu_custom_call.1} parent=31 // pred_check
          %p217 = pneg %p39
        $region34: #{tpu_custom_call.1} parent=31 // pred_check_branch
          %219 = sbr.rel (%p217) target = $region36
        $region35: #{tpu_custom_call.1} parent=31 // pred_region
          %s220 = sand.u32 %s29, 1
          %s221 = scalar_lea.sflag [#allocation3], %s220
          %s222 = sand.u32 %s29, 1
          %s223 = smul.addr %s222, 8
          %s224 = scalar_lea.vmem [#allocation2], %s223
          %226 = vsyncadd %s221, 0
          %s227 = smul.addr %s19, 8
          %s228 = scalar_lea.hbm %s0, %s227
          %s230 = sshll.u32 %s228, 4
          %s231 = int_to_ptr.hbm [resolvable:$true] %s230
          %s232 = sshll.u32 %s224, 4
          %s233 = int_to_ptr.vmem [resolvable:$true] %s232
          %235 = dma.hbm_to_vmem [thread:$0]  %s231, 128, %s233, %s221
        $region36: #{tpu_custom_call.1} parent=31 // pred_fallthru
          _
      $region32: #{tpu_custom_call.1} parent=5 // pred_fallthru
        _
      %p236 = scmp.le.s32.totalorder 1, %s19
      %p237 = scmp.lt.s32.totalorder %s19, 3
      %p238 = pnand %p236, %p237
      %p239 = pneg %p238
      // Predicated region
      $region37: #{tpu_custom_call.1} parent=5 // pred_check
        _
      $region38: #{tpu_custom_call.1} parent=5 // pred_check_branch
        %241 = sbr.rel (%p238) target = $region40
      $region39: #{tpu_custom_call.1} parent=5 // pred_region
        %s242 = ssub.s32 %s19, 1
        %s243 = sand.u32 %s32, 1
        %s244 = scalar_lea.sflag [#allocation3], %s243
        %s245 = sand.u32 %s32, 1
        %s246 = smul.addr %s245, 8
        %s247 = scalar_lea.vmem [#allocation2], %s246
        // Predicated region
        $region41: #{tpu_custom_call.1} parent=39 // pred_check
          %p248 = pneg %p45
        $region42: #{tpu_custom_call.1} parent=39 // pred_check_branch
          %250 = sbr.rel (%p248) target = $region44
        $region43: #{tpu_custom_call.1} parent=39 // pred_region
          %252 = dma.done %s244, 128
        $region44: #{tpu_custom_call.1} parent=39 // pred_fallthru
          _
        // Predicated region
        $region45: #{tpu_custom_call.1} parent=39 // pred_check
          %p253 = pneg %p66
        $region46: #{tpu_custom_call.1} parent=39 // pred_check_branch
          %255 = sbr.rel (%p253) target = $region48
        $region47: #{tpu_custom_call.1} parent=39 // pred_region
          %257 = dma.done [#allocation6], 8192
        $region48: #{tpu_custom_call.1} parent=39 // pred_fallthru
          _
        // Predicated region
        $region49: #{tpu_custom_call.1} parent=39 // pred_check
          %p258 = pneg %p87
        $region50: #{tpu_custom_call.1} parent=39 // pred_check_branch
          %260 = sbr.rel (%p258) target = $region52
        $region51: #{tpu_custom_call.1} parent=39 // pred_region
          %262 = dma.done [#allocation6], 64
        $region52: #{tpu_custom_call.1} parent=39 // pred_fallthru
          _
        // Predicated region
        $region53: #{tpu_custom_call.1} parent=39 // pred_check
          %p263 = pneg %p108
        $region54: #{tpu_custom_call.1} parent=39 // pred_check_branch
          %265 = sbr.rel (%p263) target = $region56
        $region55: #{tpu_custom_call.1} parent=39 // pred_region
          %267 = dma.done [#allocation9], 8192
        $region56: #{tpu_custom_call.1} parent=39 // pred_fallthru
          _
        %s268 = sand.u32 %s32, 1
        %s269 = scalar_lea.sflag [#allocation3], %s268
        %s270 = sand.u32 %s32, 1
        %s271 = smul.addr %s270, 8
        %s272 = scalar_lea.vmem [#allocation2], %s271
        %p273 = pneg %p45
        %p274 = pneg %p42
        %p275 = pneg %p66
        %p276 = pneg %p63
        %p277 = pneg %p87
        %p278 = pneg %p84
        %p279 = pneg %p108
        %p280 = pneg %p105
        %p281 = pneg %p129
        %p282 = pneg %p126
        %p283 = pneg %p155
        %p284 = pneg %p152
        %s285 = sand.u32 %s142, 1
        %s286 = scalar_lea.sflag [#allocation4], %s285
        %s287 = sand.u32 %s142, 1
        %s288 = smul.addr %s287, 8
        %s289 = scalar_lea.vmem [#allocation10], %s288
        %v290 = vld [vmem:[%s247] sm:$0xff]
        %v291 = vld [vmem:[#allocation5] sm:$0xff]
        %v292 = vld [vmem:[#allocation5 + $0x8] sm:$0xff]
        %v293 = vld [vmem:[#allocation5 + $0x10] sm:$0xff]
        %v294 = vld [vmem:[#allocation5 + $0x18] sm:$0xff]
        %v295 = vld [vmem:[#allocation5 + $0x20] sm:$0xff]
        %v296 = vld [vmem:[#allocation5 + $0x28] sm:$0xff]
        %v297 = vld [vmem:[#allocation5 + $0x30] sm:$0xff]
        %v298 = vld [vmem:[#allocation5 + $0x38] sm:$0xff]
        %v299 = vld [vmem:[#allocation5 + $0x40] sm:$0xff]
        %v300 = vld [vmem:[#allocation5 + $0x48] sm:$0xff]
        %v301 = vld [vmem:[#allocation5 + $0x50] sm:$0xff]
        %v302 = vld [vmem:[#allocation5 + $0x58] sm:$0xff]
        %v303 = vld [vmem:[#allocation5 + $0x60] sm:$0xff]
        %v304 = vld [vmem:[#allocation5 + $0x68] sm:$0xff]
        %v305 = vld [vmem:[#allocation5 + $0x70] sm:$0xff]
        %v306 = vld [vmem:[#allocation5 + $0x78] sm:$0xff]
        %v307 = vld [vmem:[#allocation5 + $0x80] sm:$0xff]
        %v308 = vld [vmem:[#allocation5 + $0x88] sm:$0xff]
        %v309 = vld [vmem:[#allocation5 + $0x90] sm:$0xff]
        %v310 = vld [vmem:[#allocation5 + $0x98] sm:$0xff]
        %v311 = vld [vmem:[#allocation5 + $0xa0] sm:$0xff]
        %v312 = vld [vmem:[#allocation5 + $0xa8] sm:$0xff]
        %v313 = vld [vmem:[#allocation5 + $0xb0] sm:$0xff]
        %v314 = vld [vmem:[#allocation5 + $0xb8] sm:$0xff]
        %v315 = vld [vmem:[#allocation5 + $0xc0] sm:$0xff]
        %v316 = vld [vmem:[#allocation5 + $0xc8] sm:$0xff]
        %v317 = vld [vmem:[#allocation5 + $0xd0] sm:$0xff]
        %v318 = vld [vmem:[#allocation5 + $0xd8] sm:$0xff]
        %v319 = vld [vmem:[#allocation5 + $0xe0] sm:$0xff]
        %v320 = vld [vmem:[#allocation5 + $0xe8] sm:$0xff]
        %v321 = vld [vmem:[#allocation5 + $0xf0] sm:$0xff]
        %v322 = vld [vmem:[#allocation5 + $0xf8] sm:$0xff]
        %v323 = vld [vmem:[#allocation5 + $0x100] sm:$0xff]
        %v324 = vld [vmem:[#allocation5 + $0x108] sm:$0xff]
        %v325 = vld [vmem:[#allocation5 + $0x110] sm:$0xff]
        %v326 = vld [vmem:[#allocation5 + $0x118] sm:$0xff]
        %v327 = vld [vmem:[#allocation5 + $0x120] sm:$0xff]
        %v328 = vld [vmem:[#allocation5 + $0x128] sm:$0xff]
        %v329 = vld [vmem:[#allocation5 + $0x130] sm:$0xff]
        %v330 = vld [vmem:[#allocation5 + $0x138] sm:$0xff]
        %v331 = vld [vmem:[#allocation5 + $0x140] sm:$0xff]
        %v332 = vld [vmem:[#allocation5 + $0x148] sm:$0xff]
        %v333 = vld [vmem:[#allocation5 + $0x150] sm:$0xff]
        %v334 = vld [vmem:[#allocation5 + $0x158] sm:$0xff]
        %v335 = vld [vmem:[#allocation5 + $0x160] sm:$0xff]
        %v336 = vld [vmem:[#allocation5 + $0x168] sm:$0xff]
        %v337 = vld [vmem:[#allocation5 + $0x170] sm:$0xff]
        %v338 = vld [vmem:[#allocation5 + $0x178] sm:$0xff]
        %v339 = vld [vmem:[#allocation5 + $0x180] sm:$0xff]
        %v340 = vld [vmem:[#allocation5 + $0x188] sm:$0xff]
        %v341 = vld [vmem:[#allocation5 + $0x190] sm:$0xff]
        %v342 = vld [vmem:[#allocation5 + $0x198] sm:$0xff]
        %v343 = vld [vmem:[#allocation5 + $0x1a0] sm:$0xff]
        %v344 = vld [vmem:[#allocation5 + $0x1a8] sm:$0xff]
        %v345 = vld [vmem:[#allocation5 + $0x1b0] sm:$0xff]
        %v346 = vld [vmem:[#allocation5 + $0x1b8] sm:$0xff]
        %v347 = vld [vmem:[#allocation5 + $0x1c0] sm:$0xff]
        %v348 = vld [vmem:[#allocation5 + $0x1c8] sm:$0xff]
        %v349 = vld [vmem:[#allocation5 + $0x1d0] sm:$0xff]
        %v350 = vld [vmem:[#allocation5 + $0x1d8] sm:$0xff]
        %v351 = vld [vmem:[#allocation5 + $0x1e0] sm:$0xff]
        %v352 = vld [vmem:[#allocation5 + $0x1e8] sm:$0xff]
        %v353 = vld [vmem:[#allocation5 + $0x1f0] sm:$0xff]
        %v354 = vld [vmem:[#allocation5 + $0x1f8] sm:$0xff]
        %v355 = vld [vmem:[#allocation7] sm:$0xf]
        %v357 = vperm.slane %v355, 0
        %v358 = vperm.slane %v355, 1
        %v359 = vperm.slane %v355, 2
        %v360 = vperm.slane %v355, 3
        %365 = vmatpush.msra.mxu0 %v351
        %366 = vmatpush.msra.mxu0 %v347
        %367 = vmatpush.msra.mxu0 %v343
        %368 = vmatpush.msra.mxu0 %v339
        %369 = vmatpush.msra.mxu0 %v335
        %370 = vmatpush.msra.mxu0 %v331
        %371 = vmatpush.msra.mxu0 %v327
        %372 = vmatpush.msra.mxu0 %v323
        %373 = vmatpush.msra.mxu0 %v319
        %374 = vmatpush.msra.mxu0 %v315
        %375 = vmatpush.msra.mxu0 %v311
        %376 = vmatpush.msra.mxu0 %v307
        %377 = vmatpush.msra.mxu0 %v303
        %378 = vmatpush.msra.mxu0 %v299
        %379 = vmatpush.msra.mxu0 %v295
        %380 = vmatpush.msra.mxu0 %v291
        %381 = vmatmul.f32.gmra.mxu0 %v290
        %v382 = vpop.f32.mrf.mxu0
        %v383 = vadd.f32 %v357, %v382
        %384 = vdwg.mxu0
        %385 = vmatpush.msra.mxu0 %v352
        %386 = vmatpush.msra.mxu0 %v348
        %387 = vmatpush.msra.mxu0 %v344
        %388 = vmatpush.msra.mxu0 %v340
        %389 = vmatpush.msra.mxu0 %v336
        %390 = vmatpush.msra.mxu0 %v332
        %391 = vmatpush.msra.mxu0 %v328
        %392 = vmatpush.msra.mxu0 %v324
        %393 = vmatpush.msra.mxu0 %v320
        %394 = vmatpush.msra.mxu0 %v316
        %395 = vmatpush.msra.mxu0 %v312
        %396 = vmatpush.msra.mxu0 %v308
        %397 = vmatpush.msra.mxu0 %v304
        %398 = vmatpush.msra.mxu0 %v300
        %399 = vmatpush.msra.mxu0 %v296
        %400 = vmatpush.msra.mxu0 %v292
        %401 = vmatmul.f32.gmra.mxu0 %v290
        %v402 = vpop.f32.mrf.mxu0
        %v403 = vadd.f32 %v358, %v402
        %404 = vdwg.mxu0
        %405 = vmatpush.msra.mxu0 %v353
        %406 = vmatpush.msra.mxu0 %v349
        %407 = vmatpush.msra.mxu0 %v345
        %408 = vmatpush.msra.mxu0 %v341
        %409 = vmatpush.msra.mxu0 %v337
        %410 = vmatpush.msra.mxu0 %v333
        %411 = vmatpush.msra.mxu0 %v329
        %412 = vmatpush.msra.mxu0 %v325
        %413 = vmatpush.msra.mxu0 %v321
        %414 = vmatpush.msra.mxu0 %v317
        %415 = vmatpush.msra.mxu0 %v313
        %416 = vmatpush.msra.mxu0 %v309
        %417 = vmatpush.msra.mxu0 %v305
        %418 = vmatpush.msra.mxu0 %v301
        %419 = vmatpush.msra.mxu0 %v297
        %420 = vmatpush.msra.mxu0 %v293
        %421 = vmatmul.f32.gmra.mxu0 %v290
        %v422 = vpop.f32.mrf.mxu0
        %v423 = vadd.f32 %v359, %v422
        %424 = vdwg.mxu0
        %425 = vmatpush.msra.mxu0 %v354
        %426 = vmatpush.msra.mxu0 %v350
        %427 = vmatpush.msra.mxu0 %v346
        %428 = vmatpush.msra.mxu0 %v342
        %429 = vmatpush.msra.mxu0 %v338
        %430 = vmatpush.msra.mxu0 %v334
        %431 = vmatpush.msra.mxu0 %v330
        %432 = vmatpush.msra.mxu0 %v326
        %433 = vmatpush.msra.mxu0 %v322
        %434 = vmatpush.msra.mxu0 %v318
        %435 = vmatpush.msra.mxu0 %v314
        %436 = vmatpush.msra.mxu0 %v310
        %437 = vmatpush.msra.mxu0 %v306
        %438 = vmatpush.msra.mxu0 %v302
        %439 = vmatpush.msra.mxu0 %v298
        %440 = vmatpush.msra.mxu0 %v294
        %441 = vmatmul.f32.gmra.mxu0 %v290
        %v442 = vpop.f32.mrf.mxu0
        %v443 = vadd.f32 %v360, %v442
        %444 = vdwg.mxu0
        %v445 = vmul.f32 %v383, 0.5
        %v446 = vmul.f32 %v403, 0.5
        %v447 = vmul.f32 %v423, 0.5
        %v448 = vmul.f32 %v443, 0.5
        %v449 = vmul.f32 %v383, 0.7978846
        %v450 = vmul.f32 %v403, 0.7978846
        %v451 = vmul.f32 %v423, 0.7978846
        %v452 = vmul.f32 %v443, 0.7978846
        %v453 = vmul.f32 %v383, 0.044715
        %v454 = vmul.f32 %v403, 0.044715
        %v455 = vmul.f32 %v423, 0.044715
        %v456 = vmul.f32 %v443, 0.044715
        %v457 = vmul.f32 %v453, %v383
        %v458 = vmul.f32 %v454, %v403
        %v459 = vmul.f32 %v455, %v423
        %v460 = vmul.f32 %v456, %v443
        %v461 = vadd.f32 %v457, 1.0
        %v462 = vadd.f32 %v458, 1.0
        %v463 = vadd.f32 %v459, 1.0
        %v464 = vadd.f32 %v460, 1.0
        %v465 = vmul.f32 %v449, %v461
        %v466 = vmul.f32 %v450, %v462
        %v467 = vmul.f32 %v451, %v463
        %v468 = vmul.f32 %v452, %v464
        %v469 = vtanh.pop %v465
        %v470 = vtanh.pop %v466
        %v471 = vtanh.pop %v467
        %v472 = vtanh.pop %v468
        %v473 = vadd.f32 %v469, 1.0
        %v474 = vadd.f32 %v470, 1.0
        %v475 = vadd.f32 %v471, 1.0
        %v476 = vadd.f32 %v472, 1.0
        %v477 = vmul.f32 %v445, %v473
        %v478 = vmul.f32 %v446, %v474
        %v479 = vmul.f32 %v447, %v475
        %v480 = vmul.f32 %v448, %v476
        %v481 = vld [vmem:[#allocation8] sm:$0xff]
        %v482 = vld [vmem:[#allocation8 + $0x8] sm:$0xff]
        %v483 = vld [vmem:[#allocation8 + $0x10] sm:$0xff]
        %v484 = vld [vmem:[#allocation8 + $0x18] sm:$0xff]
        %v485 = vld [vmem:[#allocation8 + $0x20] sm:$0xff]
        %v486 = vld [vmem:[#allocation8 + $0x28] sm:$0xff]
        %v487 = vld [vmem:[#allocation8 + $0x30] sm:$0xff]
        %v488 = vld [vmem:[#allocation8 + $0x38] sm:$0xff]
        %v489 = vld [vmem:[#allocation8 + $0x40] sm:$0xff]
        %v490 = vld [vmem:[#allocation8 + $0x48] sm:$0xff]
        %v491 = vld [vmem:[#allocation8 + $0x50] sm:$0xff]
        %v492 = vld [vmem:[#allocation8 + $0x58] sm:$0xff]
        %v493 = vld [vmem:[#allocation8 + $0x60] sm:$0xff]
        %v494 = vld [vmem:[#allocation8 + $0x68] sm:$0xff]
        %v495 = vld [vmem:[#allocation8 + $0x70] sm:$0xff]
        %v496 = vld [vmem:[#allocation8 + $0x78] sm:$0xff]
        %v497 = vld [vmem:[#allocation8 + $0x80] sm:$0xff]
        %v498 = vld [vmem:[#allocation8 + $0x88] sm:$0xff]
        %v499 = vld [vmem:[#allocation8 + $0x90] sm:$0xff]
        %v500 = vld [vmem:[#allocation8 + $0x98] sm:$0xff]
        %v501 = vld [vmem:[#allocation8 + $0xa0] sm:$0xff]
        %v502 = vld [vmem:[#allocation8 + $0xa8] sm:$0xff]
        %v503 = vld [vmem:[#allocation8 + $0xb0] sm:$0xff]
        %v504 = vld [vmem:[#allocation8 + $0xb8] sm:$0xff]
        %v505 = vld [vmem:[#allocation8 + $0xc0] sm:$0xff]
        %v506 = vld [vmem:[#allocation8 + $0xc8] sm:$0xff]
        %v507 = vld [vmem:[#allocation8 + $0xd0] sm:$0xff]
        %v508 = vld [vmem:[#allocation8 + $0xd8] sm:$0xff]
        %v509 = vld [vmem:[#allocation8 + $0xe0] sm:$0xff]
        %v510 = vld [vmem:[#allocation8 + $0xe8] sm:$0xff]
        %v511 = vld [vmem:[#allocation8 + $0xf0] sm:$0xff]
        %v512 = vld [vmem:[#allocation8 + $0xf8] sm:$0xff]
        %v513 = vld [vmem:[#allocation8 + $0x100] sm:$0xff]
        %v514 = vld [vmem:[#allocation8 + $0x108] sm:$0xff]
        %v515 = vld [vmem:[#allocation8 + $0x110] sm:$0xff]
        %v516 = vld [vmem:[#allocation8 + $0x118] sm:$0xff]
        %v517 = vld [vmem:[#allocation8 + $0x120] sm:$0xff]
        %v518 = vld [vmem:[#allocation8 + $0x128] sm:$0xff]
        %v519 = vld [vmem:[#allocation8 + $0x130] sm:$0xff]
        %v520 = vld [vmem:[#allocation8 + $0x138] sm:$0xff]
        %v521 = vld [vmem:[#allocation8 + $0x140] sm:$0xff]
        %v522 = vld [vmem:[#allocation8 + $0x148] sm:$0xff]
        %v523 = vld [vmem:[#allocation8 + $0x150] sm:$0xff]
        %v524 = vld [vmem:[#allocation8 + $0x158] sm:$0xff]
        %v525 = vld [vmem:[#allocation8 + $0x160] sm:$0xff]
        %v526 = vld [vmem:[#allocation8 + $0x168] sm:$0xff]
        %v527 = vld [vmem:[#allocation8 + $0x170] sm:$0xff]
        %v528 = vld [vmem:[#allocation8 + $0x178] sm:$0xff]
        %v529 = vld [vmem:[#allocation8 + $0x180] sm:$0xff]
        %v530 = vld [vmem:[#allocation8 + $0x188] sm:$0xff]
        %v531 = vld [vmem:[#allocation8 + $0x190] sm:$0xff]
        %v532 = vld [vmem:[#allocation8 + $0x198] sm:$0xff]
        %v533 = vld [vmem:[#allocation8 + $0x1a0] sm:$0xff]
        %v534 = vld [vmem:[#allocation8 + $0x1a8] sm:$0xff]
        %v535 = vld [vmem:[#allocation8 + $0x1b0] sm:$0xff]
        %v536 = vld [vmem:[#allocation8 + $0x1b8] sm:$0xff]
        %v537 = vld [vmem:[#allocation8 + $0x1c0] sm:$0xff]
        %v538 = vld [vmem:[#allocation8 + $0x1c8] sm:$0xff]
        %v539 = vld [vmem:[#allocation8 + $0x1d0] sm:$0xff]
        %v540 = vld [vmem:[#allocation8 + $0x1d8] sm:$0xff]
        %v541 = vld [vmem:[#allocation8 + $0x1e0] sm:$0xff]
        %v542 = vld [vmem:[#allocation8 + $0x1e8] sm:$0xff]
        %v543 = vld [vmem:[#allocation8 + $0x1f0] sm:$0xff]
        %v544 = vld [vmem:[#allocation8 + $0x1f8] sm:$0xff]
        %v545 = vld [vmem:[%s4] sm:$0x1]
        %v547 = vperm.slane %v545, 0
        %549 = vmatpush.msra.mxu0 %v496
        %550 = vmatpush.msra.mxu0 %v495
        %551 = vmatpush.msra.mxu0 %v494
        %552 = vmatpush.msra.mxu0 %v493
        %553 = vmatpush.msra.mxu0 %v492
        %554 = vmatpush.msra.mxu0 %v491
        %555 = vmatpush.msra.mxu0 %v490
        %556 = vmatpush.msra.mxu0 %v489
        %557 = vmatpush.msra.mxu0 %v488
        %558 = vmatpush.msra.mxu0 %v487
        %559 = vmatpush.msra.mxu0 %v486
        %560 = vmatpush.msra.mxu0 %v485
        %561 = vmatpush.msra.mxu0 %v484
        %562 = vmatpush.msra.mxu0 %v483
        %563 = vmatpush.msra.mxu0 %v482
        %564 = vmatpush.msra.mxu0 %v481
        %565 = vmatmul.f32.gmra.mxu0 %v477
        %v566 = vpop.f32.mrf.mxu0
        %v567 = vadd.f32 %v547, %v566
        %568 = vdwg.mxu0
        %569 = vmatpush.msra.mxu0 %v512
        %570 = vmatpush.msra.mxu0 %v511
        %571 = vmatpush.msra.mxu0 %v510
        %572 = vmatpush.msra.mxu0 %v509
        %573 = vmatpush.msra.mxu0 %v508
        %574 = vmatpush.msra.mxu0 %v507
        %575 = vmatpush.msra.mxu0 %v506
        %576 = vmatpush.msra.mxu0 %v505
        %577 = vmatpush.msra.mxu0 %v504
        %578 = vmatpush.msra.mxu0 %v503
        %579 = vmatpush.msra.mxu0 %v502
        %580 = vmatpush.msra.mxu0 %v501
        %581 = vmatpush.msra.mxu0 %v500
        %582 = vmatpush.msra.mxu0 %v499
        %583 = vmatpush.msra.mxu0 %v498
        %584 = vmatpush.msra.mxu0 %v497
        %585 = vmatmul.f32.gmra.mxu0 %v478
        %v586 = vpop.f32.mrf.mxu0
        %v587 = vadd.f32 %v567, %v586
        %588 = vdwg.mxu0
        %589 = vmatpush.msra.mxu0 %v528
        %590 = vmatpush.msra.mxu0 %v527
        %591 = vmatpush.msra.mxu0 %v526
        %592 = vmatpush.msra.mxu0 %v525
        %593 = vmatpush.msra.mxu0 %v524
        %594 = vmatpush.msra.mxu0 %v523
        %595 = vmatpush.msra.mxu0 %v522
        %596 = vmatpush.msra.mxu0 %v521
        %597 = vmatpush.msra.mxu0 %v520
        %598 = vmatpush.msra.mxu0 %v519
        %599 = vmatpush.msra.mxu0 %v518
        %600 = vmatpush.msra.mxu0 %v517
        %601 = vmatpush.msra.mxu0 %v516
        %602 = vmatpush.msra.mxu0 %v515
        %603 = vmatpush.msra.mxu0 %v514
        %604 = vmatpush.msra.mxu0 %v513
        %605 = vmatmul.f32.gmra.mxu0 %v479
        %v606 = vpop.f32.mrf.mxu0
        %v607 = vadd.f32 %v587, %v606
        %608 = vdwg.mxu0
        %609 = vmatpush.msra.mxu0 %v544
        %610 = vmatpush.msra.mxu0 %v543
        %611 = vmatpush.msra.mxu0 %v542
        %612 = vmatpush.msra.mxu0 %v541
        %613 = vmatpush.msra.mxu0 %v540
        %614 = vmatpush.msra.mxu0 %v539
        %615 = vmatpush.msra.mxu0 %v538
        %616 = vmatpush.msra.mxu0 %v537
        %617 = vmatpush.msra.mxu0 %v536
        %618 = vmatpush.msra.mxu0 %v535
        %619 = vmatpush.msra.mxu0 %v534
        %620 = vmatpush.msra.mxu0 %v533
        %621 = vmatpush.msra.mxu0 %v532
        %622 = vmatpush.msra.mxu0 %v531
        %623 = vmatpush.msra.mxu0 %v530
        %624 = vmatpush.msra.mxu0 %v529
        %625 = vmatmul.f32.gmra.mxu0 %v480
        %v626 = vpop.f32.mrf.mxu0
        %v627 = vadd.f32 %v607, %v626
        %628 = vdwg.mxu0
        %629 = vst [vmem:[%s289] sm:$0xff] %v627
        %s630 = sand.u32 %s142, 1
        %s631 = scalar_lea.sflag [#allocation4], %s630
        %s632 = sand.u32 %s142, 1
        %s633 = smul.addr %s632, 8
        %s634 = scalar_lea.vmem [#allocation10], %s633
        // Predicated region
        $region57: #{tpu_custom_call.1} parent=39 // pred_check
          %p635 = pneg %p152
        $region58: #{tpu_custom_call.1} parent=39 // pred_check_branch
          %637 = sbr.rel (%p635) target = $region60
        $region59: #{tpu_custom_call.1} parent=39 // pred_region
          %639 = vsyncadd %s631, 0
          %s640 = smul.addr %s24, 8
          %s641 = scalar_lea.hbm %s5, %s640
          %s643 = sshll.u32 %s634, 4
          %s644 = int_to_ptr.vmem [resolvable:$true] %s643
          %s645 = sshll.u32 %s641, 4
          %s646 = int_to_ptr.hbm [resolvable:$true] %s645
          %648 = dma.vmem_to_hbm [thread:$0]  %s644, 128, %s646, %s631
        $region60: #{tpu_custom_call.1} parent=39 // pred_fallthru
          _
      $region40: #{tpu_custom_call.1} parent=5 // pred_fallthru
        _
      %p649 = scmp.le.s32.totalorder 2, %s19
      // Predicated region
      $region61: #{tpu_custom_call.1} parent=5 // pred_check
        %p650 = pneg %p649
      $region62: #{tpu_custom_call.1} parent=5 // pred_check_branch
        %652 = sbr.rel (%p650) target = $region64
      $region63: #{tpu_custom_call.1} parent=5 // pred_region
        %s653 = ssub.s32 %s19, 2
        // Predicated region
        $region65: #{tpu_custom_call.1} parent=63 // pred_check
          %p654 = pneg %p158
        $region66: #{tpu_custom_call.1} parent=63 // pred_check_branch
          %656 = sbr.rel (%p654) target = $region68
        $region67: #{tpu_custom_call.1} parent=63 // pred_region
          %s657 = sand.u32 %s143, 1
          %s658 = scalar_lea.sflag [#allocation4], %s657
          %s659 = sand.u32 %s143, 1
          %s660 = smul.addr %s659, 8
          %s661 = scalar_lea.vmem [#allocation10], %s660
          %663 = dma.done %s658, 128
        $region68: #{tpu_custom_call.1} parent=63 // pred_fallthru
          _
      $region64: #{tpu_custom_call.1} parent=5 // pred_fallthru
        _
    $region6: #{tpu_custom_call.1} parent=1 // loop_footer
      %s23 = sadd.s32 1, %s19
    $region7: #{tpu_custom_call.1} parent=1 // loop_footer_branch
      %18 = sbr.rel target = $region3
    $region8: #{tpu_custom_call.1} parent=1 // loop_exit
      _
    %664 = vsyncpa [#allocation3], 1
    %s665 = scalar_lea.sflag [#allocation3], 1
    %666 = vsyncpa %s665, 1
    %667 = vsyncpa [#allocation6], 1
    %668 = vsyncpa [#allocation9], 1
    %669 = vsyncpa [#allocation4], 1
    %s670 = scalar_lea.sflag [#allocation4], 1
    %671 = vsyncpa %s670, 1

</llo_original>
